<compile_context>
chip_gen: v6e
topology: v6e:2x2x1
jax: 0.10.0
libtpu: 0.0.40
codegen_flags: <defaults>
</compile_context>

<pallas_src>
import jax
import jax.numpy as jnp
from jax.experimental import pallas as pl
from jax.experimental.pallas import tpu as pltpu


def _two_pass_weight_kernel(cand_ref, cw_ref, idx_ref, neg_ref, logq_ref):
    # cand_ref: (TB, P) int32 -- this tile's candidate pool rows (already row-gathered)
    # cw_ref  : (TB, P) f32   -- this tile's pool weights
    # idx_ref : (TB, N) int32 -- random indices into each pool row
    cand = cand_ref[...]                                   # (TB, P) int32
    w = cw_ref[...]                                        # (TB, P) f32
    idx = idx_ref[...]                                     # (TB, N) int32
    tb, p = cand.shape
    n = idx.shape[-1]

    # mask[b, j, :] is the one-hot row selecting cand[b, idx[b, j]].
    pos = jax.lax.broadcasted_iota(jnp.int32, (tb, n, p), 2)      # (TB, N, P)
    mask = pos == idx[:, :, None]                                 # (TB, N, P) bool

    # Exact int32 gather: masked select + cross-lane (XLU) reduction.
    neg = jnp.where(mask, cand[:, None, :], 0).sum(axis=-1)       # (TB, N) int32
    # Exact f32 weight gather the same way (exactly one hit per row).
    wsel = jnp.where(mask, w[:, None, :], jnp.float32(0.0)).sum(axis=-1)  # (TB, N)

    neg_ref[...] = neg.astype(neg_ref.dtype)
    logq_ref[...] = jnp.log(wsel)


def two_pass_weight_forward(user_id, pool, pool_weight, idx_k, *, row_tile=8):
    """Pallas implementation of two_pass_weight.forward (given pre-drawn idx_k)."""
    B = user_id.shape[0]
    P = pool.shape[1]
    N = idx_k.shape[1]

    # Row gather done in the wrapper (cheap B x P gather, per perf review).
    cand = jnp.take(pool, user_id, axis=0).astype(jnp.int32)        # (B, P)
    cw = jnp.take(pool_weight, user_id, axis=0).astype(jnp.float32)  # (B, P)
    idx = idx_k.astype(jnp.int32)                                    # (B, N)

    # Pad batch to a multiple of the row tile (sublane-full (TB, *) blocks).
    tb = max(8, row_tile)
    B_pad = ((B + tb - 1) // tb) * tb
    pad = B_pad - B
    if pad:
        cand = jnp.pad(cand, ((0, pad), (0, 0)))
        cw = jnp.pad(cw, ((0, pad), (0, 0)), constant_values=1.0)  # avoid log(0) in pad rows
        idx = jnp.pad(idx, ((0, pad), (0, 0)))

    grid = (B_pad // tb,)
    neg, logq = pl.pallas_call(
        _two_pass_weight_kernel,
        out_shape=(jax.ShapeDtypeStruct((B_pad, N), jnp.int32),
                   jax.ShapeDtypeStruct((B_pad, N), jnp.float32)),
        grid=grid,
        in_specs=[
            pl.BlockSpec((tb, P), lambda i: (i, 0)),   # candidates tile
            pl.BlockSpec((tb, P), lambda i: (i, 0)),   # candidate weights tile
            pl.BlockSpec((tb, N), lambda i: (i, 0)),   # idx_k tile
        ],
        out_specs=[
            pl.BlockSpec((tb, N), lambda i: (i, 0)),
            pl.BlockSpec((tb, N), lambda i: (i, 0)),
        ],
        compiler_params=pltpu.CompilerParams(dimension_semantics=("parallel",)),
    )(cand, cw, idx)

    return neg[:B], logq[:B]


if __name__ == "__main__":
    # Small synthetic config consistent with the module's __init__.
    num_users, num_items = 32, 64
    pool_size, num_neg = 16, 8
    batch = 8

    key = jax.random.PRNGKey(0)
    k_pool, k_w, k_uid, k_idx = jax.random.split(key, 4)

    # Deterministic "post-update_pool" state (raw __init__ zeros would give
    # log(pool_weight) = -inf, so fill with deterministic valid data of the right shapes).
    pool = jax.random.randint(k_pool, (num_users, pool_size), 0, num_items, dtype=jnp.int32)
    pool_weight = jax.nn.softmax(
        jax.random.normal(k_w, (num_users, pool_size), dtype=jnp.float32), axis=-1)

    user_id = jax.random.randint(k_uid, (batch,), 0, num_users, dtype=jnp.int32)
    # TODO(synk): torch.randint RNG stream cannot be bit-matched; same distribution via jax.random.
    idx_k = jax.random.randint(k_idx, (batch, num_neg), 0, pool_size, dtype=jnp.int32)

    neg_items, log_weight = two_pass_weight_forward(user_id, pool, pool_weight, idx_k)
    jax.block_until_ready((neg_items, log_weight))

    # Pure-JAX reference check.
    cand_ref = pool[user_id]
    cw_ref = pool_weight[user_id]
    neg_expect = jnp.take_along_axis(cand_ref, idx_k, axis=1)
    logw_expect = jnp.log(jnp.take_along_axis(cw_ref, idx_k, axis=1))

    assert neg_items.shape == (batch, num_neg) and neg_items.dtype == jnp.int32
    assert log_weight.shape == (batch, num_neg) and log_weight.dtype == jnp.float32
    assert bool(jnp.all(neg_items == neg_expect))
    assert bool(jnp.allclose(log_weight, logw_expect, rtol=1e-6, atol=1e-6))

    print("KERNEL_OK")
</pallas_src>

<mosaic_0001>
module attributes {stable_mosaic.version = 11 : i64} {
  func.func @_two_pass_weight_kernel(%arg0: i32, %arg1: memref<8x16xi32, #tpu.memory_space<vmem>>, %arg2: memref<8x16xf32, #tpu.memory_space<vmem>>, %arg3: memref<8x8xi32, #tpu.memory_space<vmem>>, %arg4: memref<8x8xi32, #tpu.memory_space<vmem>>, %arg5: memref<8x8xf32, #tpu.memory_space<vmem>>) attributes {dimension_semantics = [#tpu.dimension_semantics<parallel>], iteration_bounds = array<i64: 1>, scalar_prefetch = 0 : i64, scratch_operands = 0 : i64, tpu.core_type = #tpu.core_type<tc>, window_params = [{transform_indices = @transform_0, window_bounds = array<i64: 8, 16>}, {transform_indices = @transform_1, window_bounds = array<i64: 8, 16>}, {transform_indices = @transform_2, window_bounds = array<i64: 8, 8>}, {transform_indices = @transform_3, window_bounds = array<i64: 8, 8>}, {transform_indices = @transform_4, window_bounds = array<i64: 8, 8>}]} {
    %c0 = arith.constant 0 : index
    %c0_0 = arith.constant 0 : index
    %0 = vector.load %arg1[%c0, %c0_0] : memref<8x16xi32, #tpu.memory_space<vmem>>, vector<8x16xi32>
    %c0_1 = arith.constant 0 : index
    %c0_2 = arith.constant 0 : index
    %1 = vector.load %arg2[%c0_1, %c0_2] : memref<8x16xf32, #tpu.memory_space<vmem>>, vector<8x16xf32>
    %c0_3 = arith.constant 0 : index
    %c0_4 = arith.constant 0 : index
    %2 = vector.load %arg3[%c0_3, %c0_4] : memref<8x8xi32, #tpu.memory_space<vmem>>, vector<8x8xi32>
    %3 = tpu.iota {dimensions = array<i32: 2>} : vector<8x8x16xi32>
    %4 = vector.shape_cast %2 : vector<8x8xi32> to vector<8x8x1xi32>
    %5 = vector.broadcast %4 : vector<8x8x1xi32> to vector<8x8x16xi32>
    %6 = arith.cmpi eq, %3, %5 : vector<8x8x16xi32>
    %7 = vector.shape_cast %0 : vector<8x16xi32> to vector<8x1x16xi32>
    %c0_i32 = arith.constant 0 : i32
    %8 = vector.shape_cast %7 : vector<8x1x16xi32> to vector<8x1x16xi32>
    %9 = vector.broadcast %8 : vector<8x1x16xi32> to vector<8x8x16xi32>
    %10 = vector.broadcast %c0_i32 : i32 to vector<8x8x16xi32>
    %11 = arith.select %6, %9, %10 : vector<8x8x16xi1>, vector<8x8x16xi32>
    %cst = arith.constant dense<0> : vector<8x8xi32>
    %12 = vector.multi_reduction <add>, %11, %cst [2] : vector<8x8x16xi32> to vector<8x8xi32>
    %13 = vector.shape_cast %1 : vector<8x16xf32> to vector<8x1x16xf32>
    %cst_5 = arith.constant 0.000000e+00 : f32
    %14 = vector.shape_cast %13 : vector<8x1x16xf32> to vector<8x1x16xf32>
    %15 = vector.broadcast %14 : vector<8x1x16xf32> to vector<8x8x16xf32>
    %16 = vector.broadcast %cst_5 : f32 to vector<8x8x16xf32>
    %17 = arith.select %6, %15, %16 : vector<8x8x16xi1>, vector<8x8x16xf32>
    %cst_6 = arith.constant dense<0.000000e+00> : vector<8x8xf32>
    %18 = vector.multi_reduction <add>, %17, %cst_6 [2] : vector<8x8x16xf32> to vector<8x8xf32>
    %c0_7 = arith.constant 0 : index
    %c0_8 = arith.constant 0 : index
    %19 = vector.load %arg4[%c0_7, %c0_8] : memref<8x8xi32, #tpu.memory_space<vmem>>, vector<8x8xi32>
    tpu.vector_store %arg4[%c0_7, %c0_8], %12 {strides = array<i32>} : memref<8x8xi32, #tpu.memory_space<vmem>>, vector<8x8xi32>,
    %20 = math.log %18 : vector<8x8xf32>
    %c0_9 = arith.constant 0 : index
    %c0_10 = arith.constant 0 : index
    %21 = vector.load %arg5[%c0_9, %c0_10] : memref<8x8xf32, #tpu.memory_space<vmem>>, vector<8x8xf32>
    tpu.vector_store %arg5[%c0_9, %c0_10], %20 {strides = array<i32>} : memref<8x8xf32, #tpu.memory_space<vmem>>, vector<8x8xf32>,
    return
  }
  func.func @transform_0(%arg0: i32) -> (i32, i32) {
    %c0_i32 = arith.constant 0 : i32
    %c0_i32_0 = arith.constant 0 : i32
    return %arg0, %c0_i32 : i32, i32
  }
  func.func @transform_1(%arg0: i32) -> (i32, i32) {
    %c0_i32 = arith.constant 0 : i32
    %c0_i32_0 = arith.constant 0 : i32
    return %arg0, %c0_i32 : i32, i32
  }
  func.func @transform_2(%arg0: i32) -> (i32, i32) {
    %c0_i32 = arith.constant 0 : i32
    %c0_i32_0 = arith.constant 0 : i32
    return %arg0, %c0_i32 : i32, i32
  }
  func.func @transform_3(%arg0: i32) -> (i32, i32) {
    %c0_i32 = arith.constant 0 : i32
    %c0_i32_0 = arith.constant 0 : i32
    return %arg0, %c0_i32 : i32, i32
  }
  func.func @transform_4(%arg0: i32) -> (i32, i32) {
    %c0_i32 = arith.constant 0 : i32
    %c0_i32_0 = arith.constant 0 : i32
    return %arg0, %c0_i32 : i32, i32
  }
}

</mosaic_0001>

<llo_original>
// kernel: tpu_custom_call.1
$region0: #{tpu_custom_call.1}
  #allocation0 [shape = 'u32[]', space=smem, size = 0x4, offset = 0x4, fixed_abs, tag = 'smem constant byte address 0x4 - core index']
  #allocation1 [shape = 'u32[144,128]{1,0:T(1,128)}', space=vmem, size = 0x12000, scoped, tag = 'internal scratch']
  %s0 = inlined_call_operand.hbm [shape: s32[8,16], index: 0, kind: input, shape index: {}]
  %s1 = inlined_call_operand.hbm [shape: f32[8,16], index: 1, kind: input, shape index: {}]
  %s2 = inlined_call_operand.hbm [shape: s32[8,8], index: 2, kind: input, shape index: {}]
  %s3 = inlined_call_operand.hbm [shape: s32[8,8], index: 3, kind: output, shape index: {0}]
  %s4 = inlined_call_operand.hbm [shape: f32[8,8], index: 4, kind: output, shape index: {1}]
  %5 = xla_tuple %s3, %s4
  %s6 = sld [smem:[#allocation0]]
  $region42: #{tpu_custom_call.1} parent=0
    _
  %s8 = ssub.s32 1, %s6
  %s9 = scalar_select 0, %s8, %s6
  $region1: #{tpu_custom_call.1} parent=0
    #allocation2 [shape = 'u8[4096]{0}', space=vmem, size = 0x1000, scoped, tag = 'input window, operand 0, single buffered']
    #allocation3 [shape = 's32[1]{0}', space=sflag, size = 0x4, scoped, tag = 'scoped memory for tpu_custom_call.1']
    #allocation4 [shape = 's32[1]{0}', space=sflag, size = 0x4, scoped, tag = 'scoped memory for tpu_custom_call.1']
    #allocation5 [shape = 'u8[4096]{0}', space=vmem, size = 0x1000, scoped, tag = 'input window, operand 1, single buffered']
    #allocation6 [shape = 's32[1]{0}', space=sflag, size = 0x4, scoped, tag = 'scoped memory for tpu_custom_call.1']
    #allocation7 [shape = 'u8[4096]{0}', space=vmem, size = 0x1000, scoped, tag = 'input window, operand 2, single buffered']
    #allocation8 [shape = 'u8[4096]{0}', space=vmem, size = 0x1000, scoped, tag = 'output window, operand 0, single buffered']
    #allocation9 [shape = 'u8[4096]{0}', space=vmem, size = 0x1000, scoped, tag = 'output window, operand 1, single buffered']
    #allocation10 [shape = 's32[1]{0}', space=sflag, size = 0x4, scoped, tag = 'scoped memory for tpu_custom_call.1']
    %10 = vsyncpa [#allocation3], 0
    %11 = vsyncpa [#allocation6], 0
    %12 = vsyncpa [#allocation4], 0
    %13 = vsyncpa [#allocation10], 0
    // Predicated region
    $region2: #{tpu_custom_call.1} parent=1 // pred_check
      _
    $region3: #{tpu_custom_call.1} parent=1 // pred_check_branch
      %15 = sbr.rel (0) target = $region5
    $region4: #{tpu_custom_call.1} parent=1 // pred_region
      %s17 = ssub.s32 128, 128
      %18 = vsyncadd [#allocation3], %s17
      %s20 = sshll.u32 [#allocation2], 4
      %s21 = int_to_ptr.vmem [resolvable:$true] %s20
      %23 = dma.hbm_to_vmem [thread:$0]  %s0, 128, %s21, [#allocation3]
    $region5: #{tpu_custom_call.1} parent=1 // pred_fallthru
      _
    // Predicated region
    $region6: #{tpu_custom_call.1} parent=1 // pred_check
      _
    $region7: #{tpu_custom_call.1} parent=1 // pred_check_branch
      %25 = sbr.rel (0) target = $region9
    $region8: #{tpu_custom_call.1} parent=1 // pred_region
      %s27 = ssub.s32 128, 128
      %28 = vsyncadd [#allocation6], %s27
      %s30 = sshll.u32 [#allocation5], 4
      %s31 = int_to_ptr.vmem [resolvable:$true] %s30
      %33 = dma.hbm_to_vmem [thread:$0]  %s1, 128, %s31, [#allocation6]
    $region9: #{tpu_custom_call.1} parent=1 // pred_fallthru
      _
    // Predicated region
    $region10: #{tpu_custom_call.1} parent=1 // pred_check
      _
    $region11: #{tpu_custom_call.1} parent=1 // pred_check_branch
      %35 = sbr.rel (0) target = $region13
    $region12: #{tpu_custom_call.1} parent=1 // pred_region
      %s37 = ssub.s32 128, 128
      %38 = vsyncadd [#allocation6], %s37
      %s40 = sshll.u32 [#allocation7], 4
      %s41 = int_to_ptr.vmem [resolvable:$true] %s40
      %43 = dma.hbm_to_vmem [thread:$0]  %s2, 128, %s41, [#allocation6]
    $region13: #{tpu_custom_call.1} parent=1 // pred_fallthru
      _
    // Predicated region
    $region14: #{tpu_custom_call.1} parent=1 // pred_check
      _
    $region15: #{tpu_custom_call.1} parent=1 // pred_check_branch
      %45 = sbr.rel (0) target = $region17
    $region16: #{tpu_custom_call.1} parent=1 // pred_region
      %46 = dma.done [#allocation3], 128
    $region17: #{tpu_custom_call.1} parent=1 // pred_fallthru
      _
    // Predicated region
    $region18: #{tpu_custom_call.1} parent=1 // pred_check
      _
    $region19: #{tpu_custom_call.1} parent=1 // pred_check_branch
      %48 = sbr.rel (0) target = $region21
    $region20: #{tpu_custom_call.1} parent=1 // pred_region
      %49 = dma.done [#allocation6], 128
    $region21: #{tpu_custom_call.1} parent=1 // pred_fallthru
      _
    // Predicated region
    $region22: #{tpu_custom_call.1} parent=1 // pred_check
      _
    $region23: #{tpu_custom_call.1} parent=1 // pred_check_branch
      %51 = sbr.rel (0) target = $region25
    $region24: #{tpu_custom_call.1} parent=1 // pred_region
      %52 = dma.done [#allocation6], 128
    $region25: #{tpu_custom_call.1} parent=1 // pred_fallthru
      _
    %v53 = vld [vmem:[#allocation2] sm:$0xff]
    %v54 = vld [vmem:[#allocation5] sm:$0xff]
    %v55 = vld [vmem:[#allocation7] sm:$0xff]
    %v56 = vlaneseq
    %v57 = vand.u32 %v56, 127
    %v58 = vlaneseq
    %v59 = vshrl.u32 %v58, 7
    %v60 = vsub.s32 0, %v59
    %v61 = vrot.slane %v55, %v60
    %63 = vbcast.lane.b32.xlu0 %v61, 256
    %v64 = vpop.permute.xlu0 %63
    %v65 = vlaneseq
    %v66 = vshrl.u32 %v65, 7
    %v67 = vsub.s32 1, %v66
    %v68 = vrot.slane %v55, %v67
    %70 = vbcast.lane.b32.xlu0 %v68, 256
    %v71 = vpop.permute.xlu0 %70
    %v72 = vlaneseq
    %v73 = vshrl.u32 %v72, 7
    %v74 = vsub.s32 2, %v73
    %v75 = vrot.slane %v55, %v74
    %77 = vbcast.lane.b32.xlu0 %v75, 256
    %v78 = vpop.permute.xlu0 %77
    %v79 = vlaneseq
    %v80 = vshrl.u32 %v79, 7
    %v81 = vsub.s32 3, %v80
    %v82 = vrot.slane %v55, %v81
    %84 = vbcast.lane.b32.xlu0 %v82, 256
    %v85 = vpop.permute.xlu0 %84
    %v86 = vlaneseq
    %v87 = vshrl.u32 %v86, 7
    %v88 = vsub.s32 4, %v87
    %v89 = vrot.slane %v55, %v88
    %91 = vbcast.lane.b32.xlu0 %v89, 256
    %v92 = vpop.permute.xlu0 %91
    %v93 = vlaneseq
    %v94 = vshrl.u32 %v93, 7
    %v95 = vsub.s32 5, %v94
    %v96 = vrot.slane %v55, %v95
    %98 = vbcast.lane.b32.xlu0 %v96, 256
    %v99 = vpop.permute.xlu0 %98
    %v100 = vlaneseq
    %v101 = vshrl.u32 %v100, 7
    %v102 = vsub.s32 6, %v101
    %v103 = vrot.slane %v55, %v102
    %105 = vbcast.lane.b32.xlu0 %v103, 256
    %v106 = vpop.permute.xlu0 %105
    %v107 = vlaneseq
    %v108 = vshrl.u32 %v107, 7
    %v109 = vsub.s32 7, %v108
    %v110 = vrot.slane %v55, %v109
    %112 = vbcast.lane.b32.xlu0 %v110, 256
    %v113 = vpop.permute.xlu0 %112
    %vm114 = vcmp.eq.s32.totalorder %v57, %v64
    %vm115 = vcmp.eq.s32.totalorder %v57, %v71
    %vm116 = vcmp.eq.s32.totalorder %v57, %v78
    %vm117 = vcmp.eq.s32.totalorder %v57, %v85
    %vm118 = vcmp.eq.s32.totalorder %v57, %v92
    %vm119 = vcmp.eq.s32.totalorder %v57, %v99
    %vm120 = vcmp.eq.s32.totalorder %v57, %v106
    %vm121 = vcmp.eq.s32.totalorder %v57, %v113
    %v122 = vcombine.high %v53, %v53
    %v124 = vunpack.c.l.s4 1966171168
    %v125 = vunpack.c.0.s8 %v124
    %v126 = vlaneseq
    %v127 = vshrl.u32 %v126, 7
    %v128 = vsub.s32 %v125, %v127
    %v129 = vrot.slane %v53, %v128
    %v131 = vunpack.c.l.s4 1966171168
    %v132 = vunpack.c.0.s8 %v131
    %v133 = vlaneseq
    %v134 = vshrl.u32 %v133, 7
    %v135 = vsub.s32 %v132, %v134
    %v136 = vrot.slane %v122, %v135
    %v137 = vcombine.high %v129, %v129
    %v138 = vcombine.high %v136, %v136
    %v140 = vunpack.c.l.s4 1966171168
    %v141 = vunpack.c.0.s8 %v140
    %v142 = vlaneseq
    %v143 = vshrl.u32 %v142, 7
    %v144 = vsub.s32 %v141, %v143
    %v145 = vrot.slane %v129, %v144
    %v147 = vunpack.c.l.s4 1966171168
    %v148 = vunpack.c.0.s8 %v147
    %v149 = vlaneseq
    %v150 = vshrl.u32 %v149, 7
    %v151 = vsub.s32 %v148, %v150
    %v152 = vrot.slane %v136, %v151
    %v154 = vunpack.c.l.s4 1966171168
    %v155 = vunpack.c.0.s8 %v154
    %v156 = vlaneseq
    %v157 = vshrl.u32 %v156, 7
    %v158 = vsub.s32 %v155, %v157
    %v159 = vrot.slane %v137, %v158
    %v161 = vunpack.c.l.s4 1966171168
    %v162 = vunpack.c.0.s8 %v161
    %v163 = vlaneseq
    %v164 = vshrl.u32 %v163, 7
    %v165 = vsub.s32 %v162, %v164
    %v166 = vrot.slane %v138, %v165
    %v167 = vcombine.high %v145, %v145
    %v168 = vcombine.high %v152, %v152
    %v169 = vcombine.high %v159, %v159
    %v170 = vcombine.high %v166, %v166
    %v171 = vlaneseq
    %v172 = vshrl.u32 %v171, 7
    %v173 = vsub.s32 0, %v172
    %v174 = vrot.slane %v145, %v173
    %v175 = vlaneseq
    %v176 = vshrl.u32 %v175, 7
    %v177 = vsub.s32 0, %v176
    %v178 = vrot.slane %v159, %v177
    %v179 = vlaneseq
    %v180 = vshrl.u32 %v179, 7
    %v181 = vsub.s32 0, %v180
    %v182 = vrot.slane %v167, %v181
    %v183 = vlaneseq
    %v184 = vshrl.u32 %v183, 7
    %v185 = vsub.s32 0, %v184
    %v186 = vrot.slane %v169, %v185
    %v187 = vlaneseq
    %v188 = vshrl.u32 %v187, 7
    %v189 = vsub.s32 0, %v188
    %v190 = vrot.slane %v152, %v189
    %v191 = vlaneseq
    %v192 = vshrl.u32 %v191, 7
    %v193 = vsub.s32 0, %v192
    %v194 = vrot.slane %v166, %v193
    %v195 = vlaneseq
    %v196 = vshrl.u32 %v195, 7
    %v197 = vsub.s32 0, %v196
    %v198 = vrot.slane %v168, %v197
    %v199 = vlaneseq
    %v200 = vshrl.u32 %v199, 7
    %v201 = vsub.s32 0, %v200
    %v202 = vrot.slane %v170, %v201
    %v203 = vsel %vm114, %v174, 0
    %v204 = vsel %vm115, %v178, 0
    %v205 = vsel %vm116, %v182, 0
    %v206 = vsel %vm117, %v186, 0
    %v207 = vsel %vm118, %v190, 0
    %v208 = vsel %vm119, %v194, 0
    %v209 = vsel %vm120, %v198, 0
    %v210 = vsel %vm121, %v202, 0
    %vm211 = vcmask 130048
    %v212 = vsel %vm211, %v203, 0
    %v213 = vand.u32 %v212, 65535
    %v214 = vshrl.u32 %v212, 16
    %v215 = vcvt.s32.f32 %v213
    %v216 = vcvt.s32.f32 %v214
    %217 = vadd.xlane.f32.xlu0 %v215
    %v218 = vpop.xlane.xlu0 %217
    %219 = vadd.xlane.f32.xlu0 %v216
    %v220 = vpop.xlane.xlu0 %219
    %v221 = vcvt.f32.s32 %v218
    %v222 = vcvt.f32.s32 %v220
    %v223 = vshll.u32 %v222, 16
    %v224 = vadd.s32 %v223, %v221
    %v225 = vsel %vm211, %v204, 0
    %v226 = vand.u32 %v225, 65535
    %v227 = vshrl.u32 %v225, 16
    %v228 = vcvt.s32.f32 %v226
    %v229 = vcvt.s32.f32 %v227
    %230 = vadd.xlane.f32.xlu0 %v228
    %v231 = vpop.xlane.xlu0 %230
    %232 = vadd.xlane.f32.xlu0 %v229
    %v233 = vpop.xlane.xlu0 %232
    %v234 = vcvt.f32.s32 %v231
    %v235 = vcvt.f32.s32 %v233
    %v236 = vshll.u32 %v235, 16
    %v237 = vadd.s32 %v236, %v234
    %v238 = vsel %vm211, %v205, 0
    %v239 = vand.u32 %v238, 65535
    %v240 = vshrl.u32 %v238, 16
    %v241 = vcvt.s32.f32 %v239
    %v242 = vcvt.s32.f32 %v240
    %243 = vadd.xlane.f32.xlu0 %v241
    %v244 = vpop.xlane.xlu0 %243
    %245 = vadd.xlane.f32.xlu0 %v242
    %v246 = vpop.xlane.xlu0 %245
    %v247 = vcvt.f32.s32 %v244
    %v248 = vcvt.f32.s32 %v246
    %v249 = vshll.u32 %v248, 16
    %v250 = vadd.s32 %v249, %v247
    %v251 = vsel %vm211, %v206, 0
    %v252 = vand.u32 %v251, 65535
    %v253 = vshrl.u32 %v251, 16
    %v254 = vcvt.s32.f32 %v252
    %v255 = vcvt.s32.f32 %v253
    %256 = vadd.xlane.f32.xlu0 %v254
    %v257 = vpop.xlane.xlu0 %256
    %258 = vadd.xlane.f32.xlu0 %v255
    %v259 = vpop.xlane.xlu0 %258
    %v260 = vcvt.f32.s32 %v257
    %v261 = vcvt.f32.s32 %v259
    %v262 = vshll.u32 %v261, 16
    %v263 = vadd.s32 %v262, %v260
    %v264 = vsel %vm211, %v207, 0
    %v265 = vand.u32 %v264, 65535
    %v266 = vshrl.u32 %v264, 16
    %v267 = vcvt.s32.f32 %v265
    %v268 = vcvt.s32.f32 %v266
    %269 = vadd.xlane.f32.xlu0 %v267
    %v270 = vpop.xlane.xlu0 %269
    %271 = vadd.xlane.f32.xlu0 %v268
    %v272 = vpop.xlane.xlu0 %271
    %v273 = vcvt.f32.s32 %v270
    %v274 = vcvt.f32.s32 %v272
    %v275 = vshll.u32 %v274, 16
    %v276 = vadd.s32 %v275, %v273
    %v277 = vsel %vm211, %v208, 0
    %v278 = vand.u32 %v277, 65535
    %v279 = vshrl.u32 %v277, 16
    %v280 = vcvt.s32.f32 %v278
    %v281 = vcvt.s32.f32 %v279
    %282 = vadd.xlane.f32.xlu0 %v280
    %v283 = vpop.xlane.xlu0 %282
    %284 = vadd.xlane.f32.xlu0 %v281
    %v285 = vpop.xlane.xlu0 %284
    %v286 = vcvt.f32.s32 %v283
    %v287 = vcvt.f32.s32 %v285
    %v288 = vshll.u32 %v287, 16
    %v289 = vadd.s32 %v288, %v286
    %v290 = vsel %vm211, %v209, 0
    %v291 = vand.u32 %v290, 65535
    %v292 = vshrl.u32 %v290, 16
    %v293 = vcvt.s32.f32 %v291
    %v294 = vcvt.s32.f32 %v292
    %295 = vadd.xlane.f32.xlu0 %v293
    %v296 = vpop.xlane.xlu0 %295
    %297 = vadd.xlane.f32.xlu0 %v294
    %v298 = vpop.xlane.xlu0 %297
    %v299 = vcvt.f32.s32 %v296
    %v300 = vcvt.f32.s32 %v298
    %v301 = vshll.u32 %v300, 16
    %v302 = vadd.s32 %v301, %v299
    %v303 = vsel %vm211, %v210, 0
    %v304 = vand.u32 %v303, 65535
    %v305 = vshrl.u32 %v303, 16
    %v306 = vcvt.s32.f32 %v304
    %v307 = vcvt.s32.f32 %v305
    %308 = vadd.xlane.f32.xlu0 %v306
    %v309 = vpop.xlane.xlu0 %308
    %310 = vadd.xlane.f32.xlu0 %v307
    %v311 = vpop.xlane.xlu0 %310
    %v312 = vcvt.f32.s32 %v309
    %v313 = vcvt.f32.s32 %v311
    %v314 = vshll.u32 %v313, 16
    %v315 = vadd.s32 %v314, %v312
    %v317 = vcombine.high %v54, %v54
    %v319 = vunpack.c.l.s4 1966171168
    %v320 = vunpack.c.0.s8 %v319
    %v321 = vlaneseq
    %v322 = vshrl.u32 %v321, 7
    %v323 = vsub.s32 %v320, %v322
    %v324 = vrot.slane %v54, %v323
    %v326 = vunpack.c.l.s4 1966171168
    %v327 = vunpack.c.0.s8 %v326
    %v328 = vlaneseq
    %v329 = vshrl.u32 %v328, 7
    %v330 = vsub.s32 %v327, %v329
    %v331 = vrot.slane %v317, %v330
    %v332 = vcombine.high %v324, %v324
    %v333 = vcombine.high %v331, %v331
    %v335 = vunpack.c.l.s4 1966171168
    %v336 = vunpack.c.0.s8 %v335
    %v337 = vlaneseq
    %v338 = vshrl.u32 %v337, 7
    %v339 = vsub.s32 %v336, %v338
    %v340 = vrot.slane %v324, %v339
    %v342 = vunpack.c.l.s4 1966171168
    %v343 = vunpack.c.0.s8 %v342
    %v344 = vlaneseq
    %v345 = vshrl.u32 %v344, 7
    %v346 = vsub.s32 %v343, %v345
    %v347 = vrot.slane %v331, %v346
    %v349 = vunpack.c.l.s4 1966171168
    %v350 = vunpack.c.0.s8 %v349
    %v351 = vlaneseq
    %v352 = vshrl.u32 %v351, 7
    %v353 = vsub.s32 %v350, %v352
    %v354 = vrot.slane %v332, %v353
    %v356 = vunpack.c.l.s4 1966171168
    %v357 = vunpack.c.0.s8 %v356
    %v358 = vlaneseq
    %v359 = vshrl.u32 %v358, 7
    %v360 = vsub.s32 %v357, %v359
    %v361 = vrot.slane %v333, %v360
    %v362 = vcombine.high %v340, %v340
    %v363 = vcombine.high %v347, %v347
    %v364 = vcombine.high %v354, %v354
    %v365 = vcombine.high %v361, %v361
    %v366 = vlaneseq
    %v367 = vshrl.u32 %v366, 7
    %v368 = vsub.s32 0, %v367
    %v369 = vrot.slane %v340, %v368
    %v370 = vlaneseq
    %v371 = vshrl.u32 %v370, 7
    %v372 = vsub.s32 0, %v371
    %v373 = vrot.slane %v354, %v372
    %v374 = vlaneseq
    %v375 = vshrl.u32 %v374, 7
    %v376 = vsub.s32 0, %v375
    %v377 = vrot.slane %v362, %v376
    %v378 = vlaneseq
    %v379 = vshrl.u32 %v378, 7
    %v380 = vsub.s32 0, %v379
    %v381 = vrot.slane %v364, %v380
    %v382 = vlaneseq
    %v383 = vshrl.u32 %v382, 7
    %v384 = vsub.s32 0, %v383
    %v385 = vrot.slane %v347, %v384
    %v386 = vlaneseq
    %v387 = vshrl.u32 %v386, 7
    %v388 = vsub.s32 0, %v387
    %v389 = vrot.slane %v361, %v388
    %v390 = vlaneseq
    %v391 = vshrl.u32 %v390, 7
    %v392 = vsub.s32 0, %v391
    %v393 = vrot.slane %v363, %v392
    %v394 = vlaneseq
    %v395 = vshrl.u32 %v394, 7
    %v396 = vsub.s32 0, %v395
    %v397 = vrot.slane %v365, %v396
    %v406 = vsel %vm114, %v369, 0.0
    %v407 = vsel %vm115, %v373, 0.0
    %v408 = vsel %vm116, %v377, 0.0
    %v409 = vsel %vm117, %v381, 0.0
    %v410 = vsel %vm118, %v385, 0.0
    %v411 = vsel %vm119, %v389, 0.0
    %v412 = vsel %vm120, %v393, 0.0
    %v413 = vsel %vm121, %v397, 0.0
    %v414 = vsel %vm211, %v406, 0.0
    %415 = vadd.xlane.f32.xlu0 %v414
    %v416 = vpop.xlane.xlu0 %415
    %v417 = vsel %vm211, %v407, 0.0
    %418 = vadd.xlane.f32.xlu0 %v417
    %v419 = vpop.xlane.xlu0 %418
    %v420 = vsel %vm211, %v408, 0.0
    %421 = vadd.xlane.f32.xlu0 %v420
    %v422 = vpop.xlane.xlu0 %421
    %v423 = vsel %vm211, %v409, 0.0
    %424 = vadd.xlane.f32.xlu0 %v423
    %v425 = vpop.xlane.xlu0 %424
    %v426 = vsel %vm211, %v410, 0.0
    %427 = vadd.xlane.f32.xlu0 %v426
    %v428 = vpop.xlane.xlu0 %427
    %v429 = vsel %vm211, %v411, 0.0
    %430 = vadd.xlane.f32.xlu0 %v429
    %v431 = vpop.xlane.xlu0 %430
    %v432 = vsel %vm211, %v412, 0.0
    %433 = vadd.xlane.f32.xlu0 %v432
    %v434 = vpop.xlane.xlu0 %433
    %v435 = vsel %vm211, %v413, 0.0
    %436 = vadd.xlane.f32.xlu0 %v435
    %v437 = vpop.xlane.xlu0 %436
    %v438 = vlaneseq
    %v439 = vshrl.u32 %v438, 7
    %v440 = vsub.s32 %v57, %v439
    %v441 = vrot.slane %v224, %v440
    %v442 = vlaneseq
    %v443 = vshrl.u32 %v442, 7
    %v444 = vsub.s32 %v57, %v443
    %v445 = vrot.slane %v237, %v444
    %v446 = vlaneseq
    %v447 = vshrl.u32 %v446, 7
    %v448 = vsub.s32 %v57, %v447
    %v449 = vrot.slane %v250, %v448
    %v450 = vlaneseq
    %v451 = vshrl.u32 %v450, 7
    %v452 = vsub.s32 %v57, %v451
    %v453 = vrot.slane %v263, %v452
    %v454 = vlaneseq
    %v455 = vshrl.u32 %v454, 7
    %v456 = vsub.s32 %v57, %v455
    %v457 = vrot.slane %v276, %v456
    %v458 = vlaneseq
    %v459 = vshrl.u32 %v458, 7
    %v460 = vsub.s32 %v57, %v459
    %v461 = vrot.slane %v289, %v460
    %v462 = vlaneseq
    %v463 = vshrl.u32 %v462, 7
    %v464 = vsub.s32 %v57, %v463
    %v465 = vrot.slane %v302, %v464
    %v466 = vlaneseq
    %v467 = vshrl.u32 %v466, 7
    %v468 = vsub.s32 %v57, %v467
    %v469 = vrot.slane %v315, %v468
    %vm470 = vcmask 1041409
    %v471 = vsel %vm470, %v445, %v441
    %vm472 = vcmask 1042434
    %v473 = vsel %vm472, %v449, %v471
    %vm474 = vcmask 1043459
    %v475 = vsel %vm474, %v453, %v473
    %vm476 = vcmask 1044484
    %v477 = vsel %vm476, %v457, %v475
    %vm478 = vcmask 1045509
    %v479 = vsel %vm478, %v461, %v477
    %vm480 = vcmask 1046534
    %v481 = vsel %vm480, %v465, %v479
    %vm482 = vcmask 1047559
    %v483 = vsel %vm482, %v469, %v481
    %vm484 = vcmask 64512
    %485 = vst.msk [vmem:[#allocation8] sm:$0xff] %vm484, %v483
    %v486 = vlog2.pop %v416
    %v487 = vmul.f32 %v486, 0.6931472
    %v488 = vlog2.pop %v419
    %v489 = vmul.f32 %v488, 0.6931472
    %v490 = vlog2.pop %v422
    %v491 = vmul.f32 %v490, 0.6931472
    %v492 = vlog2.pop %v425
    %v493 = vmul.f32 %v492, 0.6931472
    %v494 = vlog2.pop %v428
    %v495 = vmul.f32 %v494, 0.6931472
    %v496 = vlog2.pop %v431
    %v497 = vmul.f32 %v496, 0.6931472
    %v498 = vlog2.pop %v434
    %v499 = vmul.f32 %v498, 0.6931472
    %v500 = vlog2.pop %v437
    %v501 = vmul.f32 %v500, 0.6931472
    %v510 = vlaneseq
    %v511 = vshrl.u32 %v510, 7
    %v512 = vsub.s32 %v57, %v511
    %v513 = vrot.slane %v487, %v512
    %v514 = vlaneseq
    %v515 = vshrl.u32 %v514, 7
    %v516 = vsub.s32 %v57, %v515
    %v517 = vrot.slane %v489, %v516
    %v518 = vlaneseq
    %v519 = vshrl.u32 %v518, 7
    %v520 = vsub.s32 %v57, %v519
    %v521 = vrot.slane %v491, %v520
    %v522 = vlaneseq
    %v523 = vshrl.u32 %v522, 7
    %v524 = vsub.s32 %v57, %v523
    %v525 = vrot.slane %v493, %v524
    %v526 = vlaneseq
    %v527 = vshrl.u32 %v526, 7
    %v528 = vsub.s32 %v57, %v527
    %v529 = vrot.slane %v495, %v528
    %v530 = vlaneseq
    %v531 = vshrl.u32 %v530, 7
    %v532 = vsub.s32 %v57, %v531
    %v533 = vrot.slane %v497, %v532
    %v534 = vlaneseq
    %v535 = vshrl.u32 %v534, 7
    %v536 = vsub.s32 %v57, %v535
    %v537 = vrot.slane %v499, %v536
    %v538 = vlaneseq
    %v539 = vshrl.u32 %v538, 7
    %v540 = vsub.s32 %v57, %v539
    %v541 = vrot.slane %v501, %v540
    %v542 = vsel %vm470, %v517, %v513
    %v543 = vsel %vm472, %v521, %v542
    %v544 = vsel %vm474, %v525, %v543
    %v545 = vsel %vm476, %v529, %v544
    %v546 = vsel %vm478, %v533, %v545
    %v547 = vsel %vm480, %v537, %v546
    %v548 = vsel %vm482, %v541, %v547
    %550 = vst.msk [vmem:[#allocation9] sm:$0xff] %vm484, %v548
    // Predicated region
    $region26: #{tpu_custom_call.1} parent=1 // pred_check
      _
    $region27: #{tpu_custom_call.1} parent=1 // pred_check_branch
      %552 = sbr.rel (0) target = $region29
    $region28: #{tpu_custom_call.1} parent=1 // pred_region
      %s554 = ssub.s32 128, 128
      %555 = vsyncadd [#allocation4], %s554
      %s557 = sshll.u32 [#allocation8], 4
      %s558 = int_to_ptr.vmem [resolvable:$true] %s557
      %560 = dma.vmem_to_hbm [thread:$0]  %s558, 128, %s3, [#allocation4]
    $region29: #{tpu_custom_call.1} parent=1 // pred_fallthru
      _
    // Predicated region
    $region30: #{tpu_custom_call.1} parent=1 // pred_check
      _
    $region31: #{tpu_custom_call.1} parent=1 // pred_check_branch
      %562 = sbr.rel (0) target = $region33
    $region32: #{tpu_custom_call.1} parent=1 // pred_region
      %s564 = ssub.s32 128, 128
      %565 = vsyncadd [#allocation10], %s564
      %s567 = sshll.u32 [#allocation9], 4
      %s568 = int_to_ptr.vmem [resolvable:$true] %s567
      %570 = dma.vmem_to_hbm [thread:$0]  %s568, 128, %s4, [#allocation10]
    $region33: #{tpu_custom_call.1} parent=1 // pred_fallthru
      _
    // Predicated region
    $region34: #{tpu_custom_call.1} parent=1 // pred_check
      _
    $region35: #{tpu_custom_call.1} parent=1 // pred_check_branch
      %572 = sbr.rel (0) target = $region37
    $region36: #{tpu_custom_call.1} parent=1 // pred_region
      %573 = dma.done [#allocation4], 128
    $region37: #{tpu_custom_call.1} parent=1 // pred_fallthru
      _
    // Predicated region
    $region38: #{tpu_custom_call.1} parent=1 // pred_check
      _
    $region39: #{tpu_custom_call.1} parent=1 // pred_check_branch
      %575 = sbr.rel (0) target = $region41
    $region40: #{tpu_custom_call.1} parent=1 // pred_region
      %576 = dma.done [#allocation10], 128
    $region41: #{tpu_custom_call.1} parent=1 // pred_fallthru
      _
    %577 = vsyncpa [#allocation3], 1
    %578 = vsyncpa [#allocation6], 1
    %579 = vsyncpa [#allocation4], 1
    %580 = vsyncpa [#allocation10], 1

</llo_original>
